<compile_context>
chip_gen: v7x
topology: tpu7x:2x2x1
jax: 0.10.0
libtpu: 0.0.40
codegen_flags: <defaults>
</compile_context>

<pallas_src>
import functools

import jax
import jax.numpy as jnp
from jax import lax
from jax.experimental import pallas as pl
from jax.experimental.pallas import tpu as pltpu

HIDDEN = 64        # logical hidden size of the PyTorch module
HIDDEN_PAD = 128   # zero-padded hidden size used inside the kernel (exact math)
OUT_PAD = 128      # lane-dense padded logit width (padded lanes masked to -inf)


def _round_up(x, m):
    return ((x + m - 1) // m) * m


def actor_kernel(obs_ref, w1_ref, b1_ref, w2_ref, b2_ref, w3_ref, b3_ref,
                 out_ref, *, out_dims):
    # Matmul-operand dtype comes from the weights (f32 or bf16); accumulation
    # and all elementwise math are f32.
    cdt = w1_ref.dtype
    x = obs_ref[...].astype(cdt)                                   # (TB, in)

    # layer1 + ReLU
    h1 = jnp.dot(x, w1_ref[...], preferred_element_type=jnp.float32)
    h1 = jnp.maximum(h1 + b1_ref[...], 0.0)                        # (TB, 128) f32

    # layer2 + ReLU
    h2 = jnp.dot(h1.astype(cdt), w2_ref[...],
                 preferred_element_type=jnp.float32)
    h2 = jnp.maximum(h2 + b2_ref[...], 0.0)                        # (TB, 128) f32

    # layer3 (logits), lane-padded to OUT_PAD
    logits = jnp.dot(h2.astype(cdt), w3_ref[...],
                     preferred_element_type=jnp.float32)
    logits = logits + b3_ref[...]                                  # (TB, OUT_PAD)

    # Padded lanes (>= out_dims) must NOT influence the softmax: mask to -inf
    # so they contribute exactly 0 to the denominator and never win the max.
    lane = lax.broadcasted_iota(jnp.int32, logits.shape, 1)
    logits = jnp.where(lane < out_dims, logits, -jnp.inf)

    # numerically-stable log_softmax over the last dim (== F.log_softmax on 2-D)
    m = jnp.max(logits, axis=-1, keepdims=True)
    shifted = logits - m
    lse = jnp.log(jnp.sum(jnp.exp(shifted), axis=-1, keepdims=True))
    out_ref[...] = shifted - lse                                   # padded lanes: -inf


def actor_forward(obs, params, *, out_dims, batch_tile=4096, min_grid_steps=2):
    """obs: (B, in_dims), any float dtype (bf16 accepted directly).
    params: dict of w1,b1,w2,b2,w3,b3 with hidden padded to HIDDEN_PAD and the
    output dim padded to OUT_PAD (weights stored (in, out))."""
    B, in_dims = obs.shape
    hidden = params["w1"].shape[1]
    out_pad = params["w3"].shape[1]

    # Large tiles amortize the ~0.35 us/grid-step fixed overhead; keep at least
    # `min_grid_steps` steps (when B allows) so v7x's 2 TensorCores both get
    # work from the "parallel" batch axis.
    tb = min(batch_tile, max(8, _round_up(pl.cdiv(B, min_grid_steps), 8)))
    tb = min(tb, _round_up(B, 8))
    grid = (pl.cdiv(B, tb),)
    # NOTE: if B % tb != 0, the last step runs log_softmax on padded rows that
    # are discarded at writeback -- valid outputs are unaffected.

    batch_map = lambda i: (i, 0)   # obs / out tiles march down the batch
    const_map = lambda i: (0, 0)   # weights & biases stay resident in VMEM

    weight_keys = ("w1", "b1", "w2", "b2", "w3", "b3")
    # These constant-index specs are only fetched once; pl.Buffered(1) would
    # shave ~75 KB of double-buffer VMEM but is negligible here, so skipped.
    weight_specs = [pl.BlockSpec(params[k].shape, const_map) for k in weight_keys]

    # Advisory cost estimate: 3 GEMMs + exp/log per output element.
    flops = 2 * B * (in_dims * hidden + hidden * hidden + hidden * out_pad)
    bytes_accessed = (
        obs.size * obs.dtype.itemsize
        + sum(int(params[k].size) * params[k].dtype.itemsize for k in weight_keys)
        + B * out_pad * 4
    )
    cost = pl.CostEstimate(flops=flops,
                           transcendentals=B * (out_pad + 1),
                           bytes_accessed=bytes_accessed)

    padded_out = pl.pallas_call(
        functools.partial(actor_kernel, out_dims=out_dims),
        out_shape=jax.ShapeDtypeStruct((B, out_pad), jnp.float32),
        grid=grid,
        in_specs=[pl.BlockSpec((tb, in_dims), batch_map)] + weight_specs,
        out_specs=pl.BlockSpec((tb, out_pad), batch_map),
        compiler_params=pltpu.CompilerParams(
            dimension_semantics=("parallel",),
            # Above v5e's 16 MiB scoped default, below v7x's 64 MiB physical.
            vmem_limit_bytes=48 * 1024 * 1024),
        cost_estimate=cost,
    )(
        obs,
        params["w1"], params["b1"],
        params["w2"], params["b2"],
        params["w3"], params["b3"],
    )
    # Kernel writes a lane-dense (B, 128) slab; slice the real log-probs here.
    return padded_out[:, :out_dims]


def init_params(key, in_dims, out_dims, hidden=HIDDEN, hidden_pad=HIDDEN_PAD,
                out_pad=OUT_PAD, matmul_dtype=jnp.float32):
    """nn.Linear-style U(-1/sqrt(fan_in), +1/sqrt(fan_in)) init.

    Returns (padded_params, raw_params):
      padded_params: hidden zero-padded to `hidden_pad`, logits zero-padded to
                     `out_pad`, weights cast to `matmul_dtype` (biases f32) --
                     fed to the kernel.
      raw_params:    unpadded f32 -- used by the pure-JAX reference.
    """
    keys = jax.random.split(key, 6)

    def linear(kw, kb, fan_in, fan_out):
        bound = 1.0 / jnp.sqrt(jnp.float32(fan_in))
        w = jax.random.uniform(kw, (fan_in, fan_out), jnp.float32, -bound, bound)
        b = jax.random.uniform(kb, (1, fan_out), jnp.float32, -bound, bound)
        return w, b

    w1, b1 = linear(keys[0], keys[1], in_dims, hidden)
    w2, b2 = linear(keys[2], keys[3], hidden, hidden)
    w3, b3 = linear(keys[4], keys[5], hidden, out_dims)

    # Hidden padding: zero weight + zero bias -> ReLU(0)=0, and padded rows of
    # w2/w3 contribute nothing, so the math is exactly equivalent.
    # Output padding: padded logit lanes are masked to -inf inside the kernel
    # before log_softmax, so the denominator is unchanged.
    hp, op = hidden_pad, out_pad
    w1p = jnp.zeros((in_dims, hp), jnp.float32).at[:, :hidden].set(w1)
    b1p = jnp.zeros((1, hp), jnp.float32).at[:, :hidden].set(b1)
    w2p = jnp.zeros((hp, hp), jnp.float32).at[:hidden, :hidden].set(w2)
    b2p = jnp.zeros((1, hp), jnp.float32).at[:, :hidden].set(b2)
    w3p = jnp.zeros((hp, op), jnp.float32).at[:hidden, :out_dims].set(w3)
    b3p = jnp.zeros((1, op), jnp.float32).at[:, :out_dims].set(b3)

    padded = dict(w1=w1p.astype(matmul_dtype), b1=b1p,
                  w2=w2p.astype(matmul_dtype), b2=b2p,
                  w3=w3p.astype(matmul_dtype), b3=b3p)
    raw = dict(w1=w1, b1=b1, w2=w2, b2=b2, w3=w3, b3=b3)
    return padded, raw


def reference_forward(obs, p):
    """Pure-JAX f32 reference of the PyTorch forward (unpadded weights)."""
    h1 = jnp.maximum(obs @ p["w1"] + p["b1"], 0.0)
    h2 = jnp.maximum(h1 @ p["w2"] + p["b2"], 0.0)
    logits = h2 @ p["w3"] + p["b3"]
    return jax.nn.log_softmax(logits, axis=-1)


if __name__ == "__main__":
    key = jax.random.PRNGKey(0)
    k_obs, k_params, k_obs2 = jax.random.split(key, 3)

    in_dims, out_dims = 16, 6

    # --- small f32 run: strict check against the PyTorch-equivalent reference ---
    B = 8
    obs = jax.random.normal(k_obs, (B, in_dims), dtype=jnp.float32)
    params_f32, raw = init_params(k_params, in_dims, out_dims,
                                  matmul_dtype=jnp.float32)
    out = jax.block_until_ready(actor_forward(obs, params_f32, out_dims=out_dims))
    ref = reference_forward(obs, raw)
    assert out.shape == (B, out_dims)
    assert jnp.allclose(out, ref, atol=1e-5, rtol=1e-5)

    # --- larger run: bf16 obs fed directly + bf16 matmul weights, 2-step grid
    #     (so both v7x TensorCores get a tile), f32 accumulation throughout. ---
    B2 = 1024
    obs2 = jax.random.normal(k_obs2, (B2, in_dims), dtype=jnp.bfloat16)
    params_bf16, raw2 = init_params(k_params, in_dims, out_dims,
                                    matmul_dtype=jnp.bfloat16)
    out2 = jax.block_until_ready(actor_forward(obs2, params_bf16, out_dims=out_dims))
    ref2 = reference_forward(obs2.astype(jnp.float32), raw2)
    assert out2.shape == (B2, out_dims)
    # bf16 matmul operands -> not bit-exact vs the f32 reference.
    assert jnp.allclose(out2, ref2, atol=3e-2, rtol=3e-2)

    print("KERNEL_OK")
</pallas_src>

<mosaic_0001>
module attributes {stable_mosaic.version = 11 : i64} {
  func.func @actor_kernel(%arg0: i32, %arg1: memref<8x16xf32, #tpu.memory_space<vmem>>, %arg2: memref<16x128xf32, #tpu.memory_space<vmem>>, %arg3: memref<1x128xf32, #tpu.memory_space<vmem>>, %arg4: memref<128x128xf32, #tpu.memory_space<vmem>>, %arg5: memref<1x128xf32, #tpu.memory_space<vmem>>, %arg6: memref<128x128xf32, #tpu.memory_space<vmem>>, %arg7: memref<1x128xf32, #tpu.memory_space<vmem>>, %arg8: memref<8x128xf32, #tpu.memory_space<vmem>>) attributes {dimension_semantics = [#tpu.dimension_semantics<parallel>], iteration_bounds = array<i64: 1>, scalar_prefetch = 0 : i64, scratch_operands = 0 : i64, tpu.core_type = #tpu.core_type<tc>, window_params = [{transform_indices = @transform_0, window_bounds = array<i64: 8, 16>}, {pipeline_mode = #tpu.pipeline_mode<synchronous>, transform_indices = @transform_1, window_bounds = array<i64: 16, 128>}, {pipeline_mode = #tpu.pipeline_mode<synchronous>, transform_indices = @transform_2, window_bounds = array<i64: 1, 128>}, {pipeline_mode = #tpu.pipeline_mode<synchronous>, transform_indices = @transform_3, window_bounds = array<i64: 128, 128>}, {pipeline_mode = #tpu.pipeline_mode<synchronous>, transform_indices = @transform_4, window_bounds = array<i64: 1, 128>}, {pipeline_mode = #tpu.pipeline_mode<synchronous>, transform_indices = @transform_5, window_bounds = array<i64: 128, 128>}, {pipeline_mode = #tpu.pipeline_mode<synchronous>, transform_indices = @transform_6, window_bounds = array<i64: 1, 128>}, {transform_indices = @transform_7, window_bounds = array<i64: 8, 128>}]} {
    %c0 = arith.constant 0 : index
    %c0_0 = arith.constant 0 : index
    %0 = vector.load %arg1[%c0, %c0_0] : memref<8x16xf32, #tpu.memory_space<vmem>>, vector<8x16xf32>
    %c0_1 = arith.constant 0 : index
    %c0_2 = arith.constant 0 : index
    %1 = vector.load %arg2[%c0_1, %c0_2] : memref<16x128xf32, #tpu.memory_space<vmem>>, vector<16x128xf32>
    %cst = arith.constant dense<0.000000e+00> : vector<8x128xf32>
    %2 = tpu.matmul %0, %1, %cst {dimension_numbers = #tpu.dot_dimension_numbers<[1], [0], [0], [1], [0, 0, 1, 1], [], []>} : vector<8x16xf32>, vector<16x128xf32>, vector<8x128xf32> -> vector<8x128xf32>
    %c0_3 = arith.constant 0 : index
    %c0_4 = arith.constant 0 : index
    %3 = vector.load %arg3[%c0_3, %c0_4] : memref<1x128xf32, #tpu.memory_space<vmem>>, vector<1x128xf32>
    %4 = vector.broadcast %3 : vector<1x128xf32> to vector<8x128xf32>
    %5 = arith.addf %2, %4 : vector<8x128xf32>
    %cst_5 = arith.constant 0.000000e+00 : f32
    %6 = vector.broadcast %cst_5 : f32 to vector<8x128xf32>
    %7 = arith.maximumf %5, %6 : vector<8x128xf32>
    %c0_6 = arith.constant 0 : index
    %c0_7 = arith.constant 0 : index
    %8 = vector.load %arg4[%c0_6, %c0_7] : memref<128x128xf32, #tpu.memory_space<vmem>>, vector<128x128xf32>
    %cst_8 = arith.constant dense<0.000000e+00> : vector<8x128xf32>
    %9 = tpu.matmul %7, %8, %cst_8 {dimension_numbers = #tpu.dot_dimension_numbers<[1], [0], [0], [1], [0, 0, 1, 1], [], []>} : vector<8x128xf32>, vector<128x128xf32>, vector<8x128xf32> -> vector<8x128xf32>
    %c0_9 = arith.constant 0 : index
    %c0_10 = arith.constant 0 : index
    %10 = vector.load %arg5[%c0_9, %c0_10] : memref<1x128xf32, #tpu.memory_space<vmem>>, vector<1x128xf32>
    %11 = vector.broadcast %10 : vector<1x128xf32> to vector<8x128xf32>
    %12 = arith.addf %9, %11 : vector<8x128xf32>
    %cst_11 = arith.constant 0.000000e+00 : f32
    %13 = vector.broadcast %cst_11 : f32 to vector<8x128xf32>
    %14 = arith.maximumf %12, %13 : vector<8x128xf32>
    %c0_12 = arith.constant 0 : index
    %c0_13 = arith.constant 0 : index
    %15 = vector.load %arg6[%c0_12, %c0_13] : memref<128x128xf32, #tpu.memory_space<vmem>>, vector<128x128xf32>
    %cst_14 = arith.constant dense<0.000000e+00> : vector<8x128xf32>
    %16 = tpu.matmul %14, %15, %cst_14 {dimension_numbers = #tpu.dot_dimension_numbers<[1], [0], [0], [1], [0, 0, 1, 1], [], []>} : vector<8x128xf32>, vector<128x128xf32>, vector<8x128xf32> -> vector<8x128xf32>
    %c0_15 = arith.constant 0 : index
    %c0_16 = arith.constant 0 : index
    %17 = vector.load %arg7[%c0_15, %c0_16] : memref<1x128xf32, #tpu.memory_space<vmem>>, vector<1x128xf32>
    %18 = vector.broadcast %17 : vector<1x128xf32> to vector<8x128xf32>
    %19 = arith.addf %16, %18 : vector<8x128xf32>
    %20 = tpu.iota {dimensions = array<i32: 1>} : vector<8x128xi32>
    %c6_i32 = arith.constant 6 : i32
    %21 = vector.broadcast %c6_i32 : i32 to vector<8x128xi32>
    %22 = arith.cmpi slt, %20, %21 : vector<8x128xi32>
    %cst_17 = arith.constant 0xFF800000 : f32
    %23 = vector.broadcast %cst_17 : f32 to vector<8x128xf32>
    %24 = arith.select %22, %19, %23 : vector<8x128xi1>, vector<8x128xf32>
    %cst_18 = arith.constant dense<0xFF800000> : vector<8xf32>
    %25 = vector.multi_reduction <maximumf>, %24, %cst_18 [1] : vector<8x128xf32> to vector<8xf32>
    %26 = vector.shape_cast %25 : vector<8xf32> to vector<8x1xf32>
    %27 = vector.broadcast %26 : vector<8x1xf32> to vector<8x128xf32>
    %28 = arith.subf %24, %27 : vector<8x128xf32>
    %29 = math.exp %28 : vector<8x128xf32>
    %cst_19 = arith.constant dense<0.000000e+00> : vector<8xf32>
    %30 = vector.multi_reduction <add>, %29, %cst_19 [1] : vector<8x128xf32> to vector<8xf32>
    %31 = vector.shape_cast %30 : vector<8xf32> to vector<8x1xf32>
    %32 = math.log %31 : vector<8x1xf32>
    %33 = vector.broadcast %32 : vector<8x1xf32> to vector<8x128xf32>
    %34 = arith.subf %28, %33 : vector<8x128xf32>
    %c0_20 = arith.constant 0 : index
    %c0_21 = arith.constant 0 : index
    %35 = vector.load %arg8[%c0_20, %c0_21] : memref<8x128xf32, #tpu.memory_space<vmem>>, vector<8x128xf32>
    tpu.vector_store %arg8[%c0_20, %c0_21], %34 {strides = array<i32>} : memref<8x128xf32, #tpu.memory_space<vmem>>, vector<8x128xf32>,
    return
  }
  func.func @transform_0(%arg0: i32) -> (i32, i32) {
    %c0_i32 = arith.constant 0 : i32
    %c0_i32_0 = arith.constant 0 : i32
    return %arg0, %c0_i32 : i32, i32
  }
  func.func @transform_1(%arg0: i32) -> (i32, i32) {
    %c0_i32 = arith.constant 0 : i32
    %c0_i32_0 = arith.constant 0 : i32
    %c0_i32_1 = arith.constant 0 : i32
    return %c0_i32, %c0_i32_0 : i32, i32
  }
  func.func @transform_2(%arg0: i32) -> (i32, i32) {
    %c0_i32 = arith.constant 0 : i32
    %c0_i32_0 = arith.constant 0 : i32
    %c0_i32_1 = arith.constant 0 : i32
    return %c0_i32, %c0_i32_0 : i32, i32
  }
  func.func @transform_3(%arg0: i32) -> (i32, i32) {
    %c0_i32 = arith.constant 0 : i32
    %c0_i32_0 = arith.constant 0 : i32
    %c0_i32_1 = arith.constant 0 : i32
    return %c0_i32, %c0_i32_0 : i32, i32
  }
  func.func @transform_4(%arg0: i32) -> (i32, i32) {
    %c0_i32 = arith.constant 0 : i32
    %c0_i32_0 = arith.constant 0 : i32
    %c0_i32_1 = arith.constant 0 : i32
    return %c0_i32, %c0_i32_0 : i32, i32
  }
  func.func @transform_5(%arg0: i32) -> (i32, i32) {
    %c0_i32 = arith.constant 0 : i32
    %c0_i32_0 = arith.constant 0 : i32
    %c0_i32_1 = arith.constant 0 : i32
    return %c0_i32, %c0_i32_0 : i32, i32
  }
  func.func @transform_6(%arg0: i32) -> (i32, i32) {
    %c0_i32 = arith.constant 0 : i32
    %c0_i32_0 = arith.constant 0 : i32
    %c0_i32_1 = arith.constant 0 : i32
    return %c0_i32, %c0_i32_0 : i32, i32
  }
  func.func @transform_7(%arg0: i32) -> (i32, i32) {
    %c0_i32 = arith.constant 0 : i32
    %c0_i32_0 = arith.constant 0 : i32
    return %arg0, %c0_i32 : i32, i32
  }
}

</mosaic_0001>

<llo_original>
// kernel: tpu_custom_call.1
$region0: #{tpu_custom_call.1}
  #allocation0 [shape = 'u32[]', space=smem, size = 0x4, offset = 0x4, fixed_abs, tag = 'smem constant byte address 0x4 - core index']
  #allocation1 [shape = 'u32[144,128]{1,0:T(1,128)}', space=vmem, size = 0x12000, scoped, tag = 'internal scratch']
  %s0 = inlined_call_operand.hbm [shape: f32[8,16], index: 0, kind: input, shape index: {}]
  %s1 = inlined_call_operand.hbm [shape: f32[16,128], index: 1, kind: input, shape index: {}]
  %s2 = inlined_call_operand.vmem [shape: f32[1,128], index: 2, kind: input, shape index: {}]
  %s3 = inlined_call_operand.hbm [shape: f32[128,128], index: 3, kind: input, shape index: {}]
  %s4 = inlined_call_operand.vmem [shape: f32[1,128], index: 4, kind: input, shape index: {}]
  %s5 = inlined_call_operand.hbm [shape: f32[128,128], index: 5, kind: input, shape index: {}]
  %s6 = inlined_call_operand.vmem [shape: f32[1,128], index: 6, kind: input, shape index: {}]
  %s7 = inlined_call_operand.hbm [shape: f32[8,128], index: 7, kind: output, shape index: {}]
  %s8 = sld [smem:[#allocation0]]
  $region54: #{tpu_custom_call.1} parent=0
    _
  %s10 = ssub.s32 1, %s8
  %s11 = scalar_select 0, %s10, %s8
  $region1: #{tpu_custom_call.1} parent=0
    #allocation2 [shape = 'u8[4096]{0}', space=vmem, size = 0x1000, scoped, tag = 'input window, operand 0, single buffered']
    #allocation3 [shape = 's32[1]{0}', space=sflag, size = 0x4, scoped, tag = 'scoped memory for tpu_custom_call.1']
    #allocation4 [shape = 's32[1]{0}', space=sflag, size = 0x4, scoped, tag = 'scoped memory for tpu_custom_call.1']
    #allocation5 [shape = 'u8[8192]{0}', space=vmem, size = 0x2000, scoped, tag = 'input window, operand 1, single buffered']
    #allocation6 [shape = 's32[1]{0}', space=sflag, size = 0x4, scoped, tag = 'scoped memory for tpu_custom_call.1']
    #allocation7 [shape = 'u8[65536]{0}', space=vmem, size = 0x10000, scoped, tag = 'input window, operand 3, single buffered']
    #allocation8 [shape = 'u8[65536]{0}', space=vmem, size = 0x10000, scoped, tag = 'input window, operand 5, single buffered']
    #allocation9 [shape = 's32[1]{0}', space=sflag, size = 0x4, scoped, tag = 'scoped memory for tpu_custom_call.1']
    #allocation10 [shape = 'u8[4096]{0}', space=vmem, size = 0x1000, scoped, tag = 'output window, operand 0, single buffered']
    %12 = vsyncpa [#allocation3], 0
    %13 = vsyncpa [#allocation6], 0
    %14 = vsyncpa [#allocation9], 0
    %15 = vsyncpa [#allocation4], 0
    // Predicated region
    $region2: #{tpu_custom_call.1} parent=1 // pred_check
      _
    $region3: #{tpu_custom_call.1} parent=1 // pred_check_branch
      %17 = sbr.rel (0) target = $region5
    $region4: #{tpu_custom_call.1} parent=1 // pred_region
      %s19 = ssub.s32 128, 128
      %20 = vsyncadd [#allocation3], %s19
      %s22 = sshll.u32 [#allocation2], 4
      %s23 = int_to_ptr.vmem [resolvable:$true] %s22
      %25 = dma.hbm_to_vmem [thread:$0]  %s0, 128, %s23, [#allocation3]
    $region5: #{tpu_custom_call.1} parent=1 // pred_fallthru
      _
    // Predicated region
    $region6: #{tpu_custom_call.1} parent=1 // pred_check
      _
    $region7: #{tpu_custom_call.1} parent=1 // pred_check_branch
      %27 = sbr.rel (0) target = $region9
    $region8: #{tpu_custom_call.1} parent=1 // pred_region
      %s29 = ssub.s32 256, 256
      %30 = vsyncadd [#allocation6], %s29
      %s31 = sshll.u32 [#allocation5], 4
      %s32 = int_to_ptr.vmem [resolvable:$true] %s31
      %37 = dma.hbm_to_vmem [thread:$0]  %s1, 256, %s32, [#allocation6], 128, 128, 8
    $region9: #{tpu_custom_call.1} parent=1 // pred_fallthru
      _
    // Predicated region
    $region10: #{tpu_custom_call.1} parent=1 // pred_check
      _
    $region11: #{tpu_custom_call.1} parent=1 // pred_check_branch
      %39 = sbr.rel (0) target = $region13
    $region12: #{tpu_custom_call.1} parent=1 // pred_region
      _
    $region13: #{tpu_custom_call.1} parent=1 // pred_fallthru
      _
    // Predicated region
    $region14: #{tpu_custom_call.1} parent=1 // pred_check
      _
    $region15: #{tpu_custom_call.1} parent=1 // pred_check_branch
      %41 = sbr.rel (0) target = $region17
    $region16: #{tpu_custom_call.1} parent=1 // pred_region
      %s43 = ssub.s32 2048, 2048
      %44 = vsyncadd [#allocation6], %s43
      %s45 = sshll.u32 [#allocation7], 4
      %s46 = int_to_ptr.vmem [resolvable:$true] %s45
      %51 = dma.hbm_to_vmem [thread:$0]  %s3, 2048, %s46, [#allocation6], 128, 128, 8
    $region17: #{tpu_custom_call.1} parent=1 // pred_fallthru
      _
    // Predicated region
    $region18: #{tpu_custom_call.1} parent=1 // pred_check
      _
    $region19: #{tpu_custom_call.1} parent=1 // pred_check_branch
      %53 = sbr.rel (0) target = $region21
    $region20: #{tpu_custom_call.1} parent=1 // pred_region
      _
    $region21: #{tpu_custom_call.1} parent=1 // pred_fallthru
      _
    // Predicated region
    $region22: #{tpu_custom_call.1} parent=1 // pred_check
      _
    $region23: #{tpu_custom_call.1} parent=1 // pred_check_branch
      %55 = sbr.rel (0) target = $region25
    $region24: #{tpu_custom_call.1} parent=1 // pred_region
      %s57 = ssub.s32 2048, 2048
      %58 = vsyncadd [#allocation9], %s57
      %s59 = sshll.u32 [#allocation8], 4
      %s60 = int_to_ptr.vmem [resolvable:$true] %s59
      %65 = dma.hbm_to_vmem [thread:$0]  %s5, 2048, %s60, [#allocation9], 128, 128, 8
    $region25: #{tpu_custom_call.1} parent=1 // pred_fallthru
      _
    // Predicated region
    $region26: #{tpu_custom_call.1} parent=1 // pred_check
      _
    $region27: #{tpu_custom_call.1} parent=1 // pred_check_branch
      %67 = sbr.rel (0) target = $region29
    $region28: #{tpu_custom_call.1} parent=1 // pred_region
      _
    $region29: #{tpu_custom_call.1} parent=1 // pred_fallthru
      _
    // Predicated region
    $region30: #{tpu_custom_call.1} parent=1 // pred_check
      _
    $region31: #{tpu_custom_call.1} parent=1 // pred_check_branch
      %69 = sbr.rel (0) target = $region33
    $region32: #{tpu_custom_call.1} parent=1 // pred_region
      %70 = dma.done [#allocation3], 128
    $region33: #{tpu_custom_call.1} parent=1 // pred_fallthru
      _
    // Predicated region
    $region34: #{tpu_custom_call.1} parent=1 // pred_check
      _
    $region35: #{tpu_custom_call.1} parent=1 // pred_check_branch
      %72 = sbr.rel (0) target = $region37
    $region36: #{tpu_custom_call.1} parent=1 // pred_region
      %73 = dma.done [#allocation6], 256
    $region37: #{tpu_custom_call.1} parent=1 // pred_fallthru
      _
    // Predicated region
    $region38: #{tpu_custom_call.1} parent=1 // pred_check
      _
    $region39: #{tpu_custom_call.1} parent=1 // pred_check_branch
      %75 = sbr.rel (0) target = $region41
    $region40: #{tpu_custom_call.1} parent=1 // pred_region
      %76 = dma.done [#allocation6], 2048
    $region41: #{tpu_custom_call.1} parent=1 // pred_fallthru
      _
    // Predicated region
    $region42: #{tpu_custom_call.1} parent=1 // pred_check
      _
    $region43: #{tpu_custom_call.1} parent=1 // pred_check_branch
      %78 = sbr.rel (0) target = $region45
    $region44: #{tpu_custom_call.1} parent=1 // pred_region
      %79 = dma.done [#allocation9], 2048
    $region45: #{tpu_custom_call.1} parent=1 // pred_fallthru
      _
    %v80 = vld [vmem:[#allocation2] sm:$0xff]
    %v81 = vld [vmem:[#allocation5] sm:$0xff]
    %v82 = vld [vmem:[#allocation5 + $0x8] sm:$0xff]
    %v83 = vld [vmem:[%s2] sm:$0x1]
    %v85 = vlaneseq
    %v86 = vshrl.u32 %v85, 7
    %v87 = vsub.s32 0, %v86
    %v88 = vrot.slane %v83, %v87
    %vm90 = vcmask 130048
    %v92 = vsel %vm90, %v80, 0
    %94 = vmatprep.subr.mxu0 0.0
    %95 = vmatpush1.msra.mxu0 %v81
    %96 = vmatprep.subr.mxu0 0.0
    %97 = vmatpush1.msra.mxu0 %v82
    %98 = vmatprep.subr.mxu0 0.0
    %99 = vmatpush1.msra.mxu0 0.0
    %100 = vmatprep.subr.mxu0 0.0
    %101 = vmatpush1.msra.mxu0 0.0
    %102 = vmatprep.subr.mxu0 0.0
    %103 = vmatpush1.msra.mxu0 0.0
    %104 = vmatprep.subr.mxu0 0.0
    %105 = vmatpush1.msra.mxu0 0.0
    %106 = vmatprep.subr.mxu0 0.0
    %107 = vmatpush1.msra.mxu0 0.0
    %108 = vmatprep.subr.mxu0 0.0
    %109 = vmatpush1.msra.mxu0 0.0
    %110 = vmatprep.subr.mxu0 0.0
    %111 = vmatpush1.msra.mxu0 0.0
    %112 = vmatprep.subr.mxu0 0.0
    %113 = vmatpush1.msra.mxu0 0.0
    %114 = vmatprep.subr.mxu0 0.0
    %115 = vmatpush1.msra.mxu0 0.0
    %116 = vmatprep.subr.mxu0 0.0
    %117 = vmatpush1.msra.mxu0 0.0
    %118 = vmatprep.subr.mxu0 0.0
    %119 = vmatpush1.msra.mxu0 0.0
    %120 = vmatprep.subr.mxu0 0.0
    %121 = vmatpush1.msra.mxu0 0.0
    %122 = vmatprep.subr.mxu0 0.0
    %123 = vmatpush1.msra.mxu0 0.0
    %124 = vmatprep.subr.mxu0 0.0
    %125 = vmatpush1.msra.mxu0 0.0
    %126 = vmatprep.subr.mxu0 0.0
    %127 = vmatpush1.msra.mxu0 0.0
    %128 = vmatprep.subr.mxu0 0.0
    %129 = vmatpush1.msra.mxu0 0.0
    %130 = vmatprep.subr.mxu0 0.0
    %131 = vmatpush1.msra.mxu0 0.0
    %132 = vmatprep.subr.mxu0 0.0
    %133 = vmatpush1.msra.mxu0 0.0
    %134 = vmatprep.subr.mxu0 0.0
    %135 = vmatpush1.msra.mxu0 0.0
    %136 = vmatprep.subr.mxu0 0.0
    %137 = vmatpush1.msra.mxu0 0.0
    %138 = vmatprep.subr.mxu0 0.0
    %139 = vmatpush1.msra.mxu0 0.0
    %140 = vmatprep.subr.mxu0 0.0
    %141 = vmatpush1.msra.mxu0 0.0
    %142 = vmatprep.subr.mxu0 0.0
    %143 = vmatpush1.msra.mxu0 0.0
    %144 = vmatprep.subr.mxu0 0.0
    %145 = vmatpush1.msra.mxu0 0.0
    %146 = vmatprep.subr.mxu0 0.0
    %147 = vmatpush1.msra.mxu0 0.0
    %148 = vmatprep.subr.mxu0 0.0
    %149 = vmatpush1.msra.mxu0 0.0
    %150 = vmatprep.subr.mxu0 0.0
    %151 = vmatpush1.msra.mxu0 0.0
    %152 = vmatprep.subr.mxu0 0.0
    %153 = vmatpush1.msra.mxu0 0.0
    %154 = vmatprep.subr.mxu0 0.0
    %155 = vmatpush1.msra.mxu0 0.0
    %156 = vmatprep.subr.mxu0 0.0
    %157 = vmatpush1.msra.mxu0 0.0
    %158 = vmatprep.mubr.f32.mxu0 0.0
    %159 = vmatmul.mubr.f32.gmra.mrb[0].mxu0 %v92
    %v160 = vpop.f32.mrb[0].mxu0
    %v161 = vadd.f32 %v88, %v160
    %v162 = vpop.f32.mrb[0].mxu0
    %163 = vdwg.mxu0
    %v164 = vmax.f32 %v161, 0.0
    %v165 = vld [vmem:[#allocation7] sm:$0xff]
    %v166 = vld [vmem:[#allocation7 + $0x8] sm:$0xff]
    %v167 = vld [vmem:[#allocation7 + $0x10] sm:$0xff]
    %v168 = vld [vmem:[#allocation7 + $0x18] sm:$0xff]
    %v169 = vld [vmem:[#allocation7 + $0x20] sm:$0xff]
    %v170 = vld [vmem:[#allocation7 + $0x28] sm:$0xff]
    %v171 = vld [vmem:[#allocation7 + $0x30] sm:$0xff]
    %v172 = vld [vmem:[#allocation7 + $0x38] sm:$0xff]
    %v173 = vld [vmem:[#allocation7 + $0x40] sm:$0xff]
    %v174 = vld [vmem:[#allocation7 + $0x48] sm:$0xff]
    %v175 = vld [vmem:[#allocation7 + $0x50] sm:$0xff]
    %v176 = vld [vmem:[#allocation7 + $0x58] sm:$0xff]
    %v177 = vld [vmem:[#allocation7 + $0x60] sm:$0xff]
    %v178 = vld [vmem:[#allocation7 + $0x68] sm:$0xff]
    %v179 = vld [vmem:[#allocation7 + $0x70] sm:$0xff]
    %v180 = vld [vmem:[#allocation7 + $0x78] sm:$0xff]
    %v181 = vld [vmem:[%s4] sm:$0x1]
    %v183 = vlaneseq
    %v184 = vshrl.u32 %v183, 7
    %v185 = vsub.s32 0, %v184
    %v186 = vrot.slane %v181, %v185
    %188 = vmatprep.subr.mxu0 0.0
    %189 = vmatpush1.msra.mxu0 %v165
    %190 = vmatprep.subr.mxu0 0.0
    %191 = vmatpush1.msra.mxu0 %v166
    %192 = vmatprep.subr.mxu0 0.0
    %193 = vmatpush1.msra.mxu0 %v167
    %194 = vmatprep.subr.mxu0 0.0
    %195 = vmatpush1.msra.mxu0 %v168
    %196 = vmatprep.subr.mxu0 0.0
    %197 = vmatpush1.msra.mxu0 %v169
    %198 = vmatprep.subr.mxu0 0.0
    %199 = vmatpush1.msra.mxu0 %v170
    %200 = vmatprep.subr.mxu0 0.0
    %201 = vmatpush1.msra.mxu0 %v171
    %202 = vmatprep.subr.mxu0 0.0
    %203 = vmatpush1.msra.mxu0 %v172
    %204 = vmatprep.subr.mxu0 0.0
    %205 = vmatpush1.msra.mxu0 %v173
    %206 = vmatprep.subr.mxu0 0.0
    %207 = vmatpush1.msra.mxu0 %v174
    %208 = vmatprep.subr.mxu0 0.0
    %209 = vmatpush1.msra.mxu0 %v175
    %210 = vmatprep.subr.mxu0 0.0
    %211 = vmatpush1.msra.mxu0 %v176
    %212 = vmatprep.subr.mxu0 0.0
    %213 = vmatpush1.msra.mxu0 %v177
    %214 = vmatprep.subr.mxu0 0.0
    %215 = vmatpush1.msra.mxu0 %v178
    %216 = vmatprep.subr.mxu0 0.0
    %217 = vmatpush1.msra.mxu0 %v179
    %218 = vmatprep.subr.mxu0 0.0
    %219 = vmatpush1.msra.mxu0 %v180
    %220 = vmatprep.subr.mxu0 0.0
    %221 = vmatpush1.msra.mxu0 0.0
    %222 = vmatprep.subr.mxu0 0.0
    %223 = vmatpush1.msra.mxu0 0.0
    %224 = vmatprep.subr.mxu0 0.0
    %225 = vmatpush1.msra.mxu0 0.0
    %226 = vmatprep.subr.mxu0 0.0
    %227 = vmatpush1.msra.mxu0 0.0
    %228 = vmatprep.subr.mxu0 0.0
    %229 = vmatpush1.msra.mxu0 0.0
    %230 = vmatprep.subr.mxu0 0.0
    %231 = vmatpush1.msra.mxu0 0.0
    %232 = vmatprep.subr.mxu0 0.0
    %233 = vmatpush1.msra.mxu0 0.0
    %234 = vmatprep.subr.mxu0 0.0
    %235 = vmatpush1.msra.mxu0 0.0
    %236 = vmatprep.subr.mxu0 0.0
    %237 = vmatpush1.msra.mxu0 0.0
    %238 = vmatprep.subr.mxu0 0.0
    %239 = vmatpush1.msra.mxu0 0.0
    %240 = vmatprep.subr.mxu0 0.0
    %241 = vmatpush1.msra.mxu0 0.0
    %242 = vmatprep.subr.mxu0 0.0
    %243 = vmatpush1.msra.mxu0 0.0
    %244 = vmatprep.subr.mxu0 0.0
    %245 = vmatpush1.msra.mxu0 0.0
    %246 = vmatprep.subr.mxu0 0.0
    %247 = vmatpush1.msra.mxu0 0.0
    %248 = vmatprep.subr.mxu0 0.0
    %249 = vmatpush1.msra.mxu0 0.0
    %250 = vmatprep.subr.mxu0 0.0
    %251 = vmatpush1.msra.mxu0 0.0
    %252 = vmatprep.mubr.f32.mxu0 0.0
    %253 = vmatmul.mubr.f32.gmra.mrb[0].mxu0 %v164
    %v254 = vpop.f32.mrb[0].mxu0
    %v255 = vadd.f32 %v186, %v254
    %v256 = vpop.f32.mrb[0].mxu0
    %257 = vdwg.mxu0
    %v258 = vmax.f32 %v255, 0.0
    %v259 = vld [vmem:[#allocation8] sm:$0xff]
    %v260 = vld [vmem:[#allocation8 + $0x8] sm:$0xff]
    %v261 = vld [vmem:[#allocation8 + $0x10] sm:$0xff]
    %v262 = vld [vmem:[#allocation8 + $0x18] sm:$0xff]
    %v263 = vld [vmem:[#allocation8 + $0x20] sm:$0xff]
    %v264 = vld [vmem:[#allocation8 + $0x28] sm:$0xff]
    %v265 = vld [vmem:[#allocation8 + $0x30] sm:$0xff]
    %v266 = vld [vmem:[#allocation8 + $0x38] sm:$0xff]
    %v267 = vld [vmem:[#allocation8 + $0x40] sm:$0xff]
    %v268 = vld [vmem:[#allocation8 + $0x48] sm:$0xff]
    %v269 = vld [vmem:[#allocation8 + $0x50] sm:$0xff]
    %v270 = vld [vmem:[#allocation8 + $0x58] sm:$0xff]
    %v271 = vld [vmem:[#allocation8 + $0x60] sm:$0xff]
    %v272 = vld [vmem:[#allocation8 + $0x68] sm:$0xff]
    %v273 = vld [vmem:[#allocation8 + $0x70] sm:$0xff]
    %v274 = vld [vmem:[#allocation8 + $0x78] sm:$0xff]
    %v275 = vld [vmem:[%s6] sm:$0x1]
    %v277 = vlaneseq
    %v278 = vshrl.u32 %v277, 7
    %v279 = vsub.s32 0, %v278
    %v280 = vrot.slane %v275, %v279
    %282 = vmatprep.subr.mxu0 0.0
    %283 = vmatpush1.msra.mxu0 %v259
    %284 = vmatprep.subr.mxu0 0.0
    %285 = vmatpush1.msra.mxu0 %v260
    %286 = vmatprep.subr.mxu0 0.0
    %287 = vmatpush1.msra.mxu0 %v261
    %288 = vmatprep.subr.mxu0 0.0
    %289 = vmatpush1.msra.mxu0 %v262
    %290 = vmatprep.subr.mxu0 0.0
    %291 = vmatpush1.msra.mxu0 %v263
    %292 = vmatprep.subr.mxu0 0.0
    %293 = vmatpush1.msra.mxu0 %v264
    %294 = vmatprep.subr.mxu0 0.0
    %295 = vmatpush1.msra.mxu0 %v265
    %296 = vmatprep.subr.mxu0 0.0
    %297 = vmatpush1.msra.mxu0 %v266
    %298 = vmatprep.subr.mxu0 0.0
    %299 = vmatpush1.msra.mxu0 %v267
    %300 = vmatprep.subr.mxu0 0.0
    %301 = vmatpush1.msra.mxu0 %v268
    %302 = vmatprep.subr.mxu0 0.0
    %303 = vmatpush1.msra.mxu0 %v269
    %304 = vmatprep.subr.mxu0 0.0
    %305 = vmatpush1.msra.mxu0 %v270
    %306 = vmatprep.subr.mxu0 0.0
    %307 = vmatpush1.msra.mxu0 %v271
    %308 = vmatprep.subr.mxu0 0.0
    %309 = vmatpush1.msra.mxu0 %v272
    %310 = vmatprep.subr.mxu0 0.0
    %311 = vmatpush1.msra.mxu0 %v273
    %312 = vmatprep.subr.mxu0 0.0
    %313 = vmatpush1.msra.mxu0 %v274
    %314 = vmatprep.subr.mxu0 0.0
    %315 = vmatpush1.msra.mxu0 0.0
    %316 = vmatprep.subr.mxu0 0.0
    %317 = vmatpush1.msra.mxu0 0.0
    %318 = vmatprep.subr.mxu0 0.0
    %319 = vmatpush1.msra.mxu0 0.0
    %320 = vmatprep.subr.mxu0 0.0
    %321 = vmatpush1.msra.mxu0 0.0
    %322 = vmatprep.subr.mxu0 0.0
    %323 = vmatpush1.msra.mxu0 0.0
    %324 = vmatprep.subr.mxu0 0.0
    %325 = vmatpush1.msra.mxu0 0.0
    %326 = vmatprep.subr.mxu0 0.0
    %327 = vmatpush1.msra.mxu0 0.0
    %328 = vmatprep.subr.mxu0 0.0
    %329 = vmatpush1.msra.mxu0 0.0
    %330 = vmatprep.subr.mxu0 0.0
    %331 = vmatpush1.msra.mxu0 0.0
    %332 = vmatprep.subr.mxu0 0.0
    %333 = vmatpush1.msra.mxu0 0.0
    %334 = vmatprep.subr.mxu0 0.0
    %335 = vmatpush1.msra.mxu0 0.0
    %336 = vmatprep.subr.mxu0 0.0
    %337 = vmatpush1.msra.mxu0 0.0
    %338 = vmatprep.subr.mxu0 0.0
    %339 = vmatpush1.msra.mxu0 0.0
    %340 = vmatprep.subr.mxu0 0.0
    %341 = vmatpush1.msra.mxu0 0.0
    %342 = vmatprep.subr.mxu0 0.0
    %343 = vmatpush1.msra.mxu0 0.0
    %344 = vmatprep.subr.mxu0 0.0
    %345 = vmatpush1.msra.mxu0 0.0
    %346 = vmatprep.mubr.f32.mxu0 0.0
    %347 = vmatmul.mubr.f32.gmra.mrb[0].mxu0 %v258
    %v348 = vpop.f32.mrb[0].mxu0
    %v349 = vadd.f32 %v280, %v348
    %v350 = vpop.f32.mrb[0].mxu0
    %351 = vdwg.mxu0
    %v352 = vlaneseq
    %v353 = vand.u32 %v352, 127
    %vm354 = vcmp.lt.s32.totalorder %v353, 6
    %v355 = vsel %vm354, %v349, -inf
    %356 = vmax.xlane.f32.xlu0 %v355
    %v357 = vpop.xlane.xlu0 %356
    %v358 = vsub.f32 %v355, %v357
    %v359 = vmul.f32 %v358, 1.442695
    %v360 = vpow.pop %v359
    %361 = vadd.xlane.f32.xlu0 %v360
    %v362 = vpop.xlane.xlu0 %361
    %v363 = vlog2.pop %v362
    %v364 = vmul.f32 %v363, 0.6931472
    %v365 = vsub.f32 %v358, %v364
    %366 = vst [vmem:[#allocation10] sm:$0xff] %v365
    // Predicated region
    $region46: #{tpu_custom_call.1} parent=1 // pred_check
      _
    $region47: #{tpu_custom_call.1} parent=1 // pred_check_branch
      %368 = sbr.rel (0) target = $region49
    $region48: #{tpu_custom_call.1} parent=1 // pred_region
      %s370 = ssub.s32 128, 128
      %371 = vsyncadd [#allocation4], %s370
      %s373 = sshll.u32 [#allocation10], 4
      %s374 = int_to_ptr.vmem [resolvable:$true] %s373
      %376 = dma.vmem_to_hbm [thread:$0]  %s374, 128, %s7, [#allocation4]
    $region49: #{tpu_custom_call.1} parent=1 // pred_fallthru
      _
    // Predicated region
    $region50: #{tpu_custom_call.1} parent=1 // pred_check
      _
    $region51: #{tpu_custom_call.1} parent=1 // pred_check_branch
      %378 = sbr.rel (0) target = $region53
    $region52: #{tpu_custom_call.1} parent=1 // pred_region
      %379 = dma.done [#allocation4], 128
    $region53: #{tpu_custom_call.1} parent=1 // pred_fallthru
      _
    %380 = vsyncpa [#allocation3], 1
    %381 = vsyncpa [#allocation6], 1
    %382 = vsyncpa [#allocation9], 1
    %383 = vsyncpa [#allocation4], 1

</llo_original>
